<compile_context>
chip_gen: v7x
topology: tpu7x:2x2x1
jax: 0.10.0
libtpu: 0.0.40
codegen_flags: <defaults>
</compile_context>

<pallas_src>
import functools
import math

import jax
import jax.numpy as jnp
from jax.experimental import pallas as pl
from jax.experimental.pallas import tpu as pltpu

N_STATE = 5
N_INPUT = 2
PACK_ROWS = 8  # [x, y, cos, sin, v, accel, yaw_rate, zero-pad] == one vreg sublane height


def _dynamics_kernel(p_ref, out_ref, *, delta_t):
    # p_ref: (8, TILE) packed component-major block; lanes = flattened batch rows.
    x     = p_ref[0:1, :]
    y     = p_ref[1:2, :]
    cos_h = p_ref[2:3, :]
    sin_h = p_ref[3:4, :]
    vel   = p_ref[4:5, :]
    accel = p_ref[5:6, :]
    yaw   = p_ref[6:7, :]

    # Euler step, written row-by-row with full-lane-width elementwise ops.
    out_ref[0:1, :] = x + delta_t * (vel * cos_h)          # x     += dt * v * cos
    out_ref[1:2, :] = y + delta_t * (vel * sin_h)          # y     += dt * v * sin
    out_ref[2:3, :] = cos_h - delta_t * (yaw * sin_h)      # cos   += dt * (-w * sin)
    out_ref[3:4, :] = sin_h + delta_t * (yaw * cos_h)      # sin   += dt * ( w * cos)
    out_ref[4:5, :] = vel + delta_t * accel                # v     += dt * accel


def dynamics_forward(state, _input, *, delta_t, tile_lanes=32768):
    """Euler-integrated dynamics step: state + delta_t * state_dot(state, input)."""
    assert state.shape[-1] == N_STATE and _input.shape[-1] == N_INPUT
    assert state.shape[:-1] == _input.shape[:-1]
    assert tile_lanes % 128 == 0

    lead = state.shape[:-1]
    n = math.prod(lead) if lead else 1
    dtype = state.dtype

    s2 = state.reshape(n, N_STATE)
    u2 = _input.reshape(n, N_INPUT).astype(dtype)

    # Large lane tile, capped so small problems (like the demo) run as a single block.
    n_rounded = ((n + 127) // 128) * 128
    tile = min(tile_lanes, n_rounded)
    n_pad = ((n + tile - 1) // tile) * tile
    pad = n_pad - n

    # Build the component-major lane-dense slab (8, n_pad).  The transpose /
    # concat / tail-pad fuse into the single layout-plumbing op the lane-dense
    # kernel needs (no extra full-array jnp.pad copy of the original inputs).
    packed = jnp.concatenate(
        [s2.T, u2.T, jnp.zeros((PACK_ROWS - N_STATE - N_INPUT, n), dtype)],
        axis=0,
    )
    if pad:
        packed = jnp.pad(packed, ((0, 0), (0, pad)))

    kernel = functools.partial(_dynamics_kernel, delta_t=delta_t)

    out = pl.pallas_call(
        kernel,
        out_shape=jax.ShapeDtypeStruct((N_STATE, n_pad), dtype),
        grid_spec=pltpu.PrefetchScalarGridSpec(
            num_scalar_prefetch=0,
            grid=(n_pad // tile,),
            in_specs=[
                pl.BlockSpec((PACK_ROWS, tile), lambda i: (0, i)),
            ],
            out_specs=pl.BlockSpec((N_STATE, tile), lambda i: (0, i)),
        ),
        compiler_params=pltpu.CompilerParams(
            dimension_semantics=("parallel",),
        ),
    )(packed)

    return out[:, :n].T.reshape(*lead, N_STATE)


def _reference_forward(state, _input, delta_t):
    """Pure-JAX reference matching the PyTorch module semantics exactly."""
    accel = _input[..., 0]
    yaw_rate = _input[..., 1]
    sd0 = state[..., 4] * state[..., 2]
    sd1 = state[..., 4] * state[..., 3]
    sd2 = -yaw_rate * state[..., 3]
    sd3 = yaw_rate * state[..., 2]
    sd4 = accel
    state_dot = jnp.stack([sd0, sd1, sd2, sd3, sd4], axis=-1)
    return state + delta_t * state_dot


if __name__ == "__main__":
    # DynamicsLayer hyperparameters (deterministic, no learnable weights).
    delta_t = 0.1
    max_acc = 3.0          # used only by activation_fn (not part of forward)
    max_yaw_rate = 0.5     # used only by activation_fn (not part of forward)
    # TODO(synk): activation_fn (tanh clamping of raw controls) and
    # get_state_from_features are trivial elementwise/slicing glue outside
    # forward(); left in plain JAX if ever needed.

    key = jax.random.PRNGKey(0)
    k_s, k_u = jax.random.split(key)

    # Small shapes: (batch=2, agents=8, horizon=16) leading dims.
    lead_shape = (2, 8, 16)
    state = jax.random.normal(k_s, lead_shape + (N_STATE,), dtype=jnp.float32)
    _input = jax.random.normal(k_u, lead_shape + (N_INPUT,), dtype=jnp.float32)

    out = dynamics_forward(state, _input, delta_t=delta_t)
    out = jax.block_until_ready(out)

    ref = _reference_forward(state, _input, delta_t)
    assert out.shape == ref.shape == lead_shape + (N_STATE,)
    assert jnp.allclose(out, ref, atol=1e-6, rtol=1e-6), "mismatch vs reference"

    print("KERNEL_OK")
</pallas_src>

<mosaic_0001>
module attributes {stable_mosaic.version = 11 : i64} {
  func.func @_dynamics_kernel(%arg0: i32, %arg1: memref<8x256xf32, #tpu.memory_space<vmem>>, %arg2: memref<5x256xf32, #tpu.memory_space<vmem>>) attributes {dimension_semantics = [#tpu.dimension_semantics<parallel>], iteration_bounds = array<i64: 1>, scalar_prefetch = 0 : i64, scratch_operands = 0 : i64, tpu.core_type = #tpu.core_type<tc>, window_params = [{transform_indices = @transform_0, window_bounds = array<i64: 8, 256>}, {transform_indices = @transform_1, window_bounds = array<i64: 5, 256>}]} {
    %c0 = arith.constant 0 : index
    %c0_0 = arith.constant 0 : index
    %0 = vector.load %arg1[%c0, %c0_0] : memref<8x256xf32, #tpu.memory_space<vmem>>, vector<1x256xf32>
    %c1 = arith.constant 1 : index
    %c0_1 = arith.constant 0 : index
    %1 = vector.load %arg1[%c1, %c0_1] : memref<8x256xf32, #tpu.memory_space<vmem>>, vector<1x256xf32>
    %c2 = arith.constant 2 : index
    %c0_2 = arith.constant 0 : index
    %2 = vector.load %arg1[%c2, %c0_2] : memref<8x256xf32, #tpu.memory_space<vmem>>, vector<1x256xf32>
    %c3 = arith.constant 3 : index
    %c0_3 = arith.constant 0 : index
    %3 = vector.load %arg1[%c3, %c0_3] : memref<8x256xf32, #tpu.memory_space<vmem>>, vector<1x256xf32>
    %c4 = arith.constant 4 : index
    %c0_4 = arith.constant 0 : index
    %4 = vector.load %arg1[%c4, %c0_4] : memref<8x256xf32, #tpu.memory_space<vmem>>, vector<1x256xf32>
    %c5 = arith.constant 5 : index
    %c0_5 = arith.constant 0 : index
    %5 = vector.load %arg1[%c5, %c0_5] : memref<8x256xf32, #tpu.memory_space<vmem>>, vector<1x256xf32>
    %c6 = arith.constant 6 : index
    %c0_6 = arith.constant 0 : index
    %6 = vector.load %arg1[%c6, %c0_6] : memref<8x256xf32, #tpu.memory_space<vmem>>, vector<1x256xf32>
    %7 = arith.mulf %4, %2 : vector<1x256xf32>
    %cst = arith.constant 1.000000e-01 : f32
    %8 = vector.broadcast %cst : f32 to vector<1x256xf32>
    %9 = arith.mulf %8, %7 : vector<1x256xf32>
    %10 = arith.addf %0, %9 : vector<1x256xf32>
    %c0_7 = arith.constant 0 : index
    %c0_8 = arith.constant 0 : index
    %11 = vector.load %arg2[%c0_7, %c0_8] : memref<5x256xf32, #tpu.memory_space<vmem>>, vector<1x256xf32>
    tpu.vector_store %arg2[%c0_7, %c0_8], %10 {strides = array<i32>} : memref<5x256xf32, #tpu.memory_space<vmem>>, vector<1x256xf32>,
    %12 = arith.mulf %4, %3 : vector<1x256xf32>
    %cst_9 = arith.constant 1.000000e-01 : f32
    %13 = vector.broadcast %cst_9 : f32 to vector<1x256xf32>
    %14 = arith.mulf %13, %12 : vector<1x256xf32>
    %15 = arith.addf %1, %14 : vector<1x256xf32>
    %c1_10 = arith.constant 1 : index
    %c0_11 = arith.constant 0 : index
    %16 = vector.load %arg2[%c1_10, %c0_11] : memref<5x256xf32, #tpu.memory_space<vmem>>, vector<1x256xf32>
    tpu.vector_store %arg2[%c1_10, %c0_11], %15 {strides = array<i32>} : memref<5x256xf32, #tpu.memory_space<vmem>>, vector<1x256xf32>,
    %17 = arith.mulf %6, %3 : vector<1x256xf32>
    %cst_12 = arith.constant 1.000000e-01 : f32
    %18 = vector.broadcast %cst_12 : f32 to vector<1x256xf32>
    %19 = arith.mulf %18, %17 : vector<1x256xf32>
    %20 = arith.subf %2, %19 : vector<1x256xf32>
    %c2_13 = arith.constant 2 : index
    %c0_14 = arith.constant 0 : index
    %21 = vector.load %arg2[%c2_13, %c0_14] : memref<5x256xf32, #tpu.memory_space<vmem>>, vector<1x256xf32>
    tpu.vector_store %arg2[%c2_13, %c0_14], %20 {strides = array<i32>} : memref<5x256xf32, #tpu.memory_space<vmem>>, vector<1x256xf32>,
    %22 = arith.mulf %6, %2 : vector<1x256xf32>
    %cst_15 = arith.constant 1.000000e-01 : f32
    %23 = vector.broadcast %cst_15 : f32 to vector<1x256xf32>
    %24 = arith.mulf %23, %22 : vector<1x256xf32>
    %25 = arith.addf %3, %24 : vector<1x256xf32>
    %c3_16 = arith.constant 3 : index
    %c0_17 = arith.constant 0 : index
    %26 = vector.load %arg2[%c3_16, %c0_17] : memref<5x256xf32, #tpu.memory_space<vmem>>, vector<1x256xf32>
    tpu.vector_store %arg2[%c3_16, %c0_17], %25 {strides = array<i32>} : memref<5x256xf32, #tpu.memory_space<vmem>>, vector<1x256xf32>,
    %cst_18 = arith.constant 1.000000e-01 : f32
    %27 = vector.broadcast %cst_18 : f32 to vector<1x256xf32>
    %28 = arith.mulf %27, %5 : vector<1x256xf32>
    %29 = arith.addf %4, %28 : vector<1x256xf32>
    %c4_19 = arith.constant 4 : index
    %c0_20 = arith.constant 0 : index
    %30 = vector.load %arg2[%c4_19, %c0_20] : memref<5x256xf32, #tpu.memory_space<vmem>>, vector<1x256xf32>
    tpu.vector_store %arg2[%c4_19, %c0_20], %29 {strides = array<i32>} : memref<5x256xf32, #tpu.memory_space<vmem>>, vector<1x256xf32>,
    return
  }
  func.func @transform_0(%arg0: i32) -> (i32, i32) {
    %c0_i32 = arith.constant 0 : i32
    %c0_i32_0 = arith.constant 0 : i32
    return %c0_i32, %arg0 : i32, i32
  }
  func.func @transform_1(%arg0: i32) -> (i32, i32) {
    %c0_i32 = arith.constant 0 : i32
    %c0_i32_0 = arith.constant 0 : i32
    return %c0_i32, %arg0 : i32, i32
  }
}

</mosaic_0001>

<llo_original>
// kernel: tpu_custom_call.1
$region0: #{tpu_custom_call.1}
  #allocation0 [shape = 'u32[]', space=smem, size = 0x4, offset = 0x4, fixed_abs, tag = 'smem constant byte address 0x4 - core index']
  #allocation1 [shape = 'u32[144,128]{1,0:T(1,128)}', space=vmem, size = 0x12000, scoped, tag = 'internal scratch']
  %s0 = inlined_call_operand.hbm [shape: f32[8,256], index: 0, kind: input, shape index: {}]
  %s1 = inlined_call_operand.hbm [shape: f32[5,256], index: 1, kind: output, shape index: {}]
  %s2 = sld [smem:[#allocation0]]
  $region18: #{tpu_custom_call.1} parent=0
    _
  %s4 = ssub.s32 1, %s2
  %s5 = scalar_select 0, %s4, %s2
  $region1: #{tpu_custom_call.1} parent=0
    #allocation2 [shape = 'u8[8192]{0}', space=vmem, size = 0x2000, scoped, tag = 'input window, operand 0, single buffered']
    #allocation3 [shape = 's32[1]{0}', space=sflag, size = 0x4, scoped, tag = 'scoped memory for tpu_custom_call.1']
    #allocation4 [shape = 's32[1]{0}', space=sflag, size = 0x4, scoped, tag = 'scoped memory for tpu_custom_call.1']
    #allocation5 [shape = 'u8[8192]{0}', space=vmem, size = 0x2000, scoped, tag = 'output window, operand 0, single buffered']
    %6 = vsyncpa [#allocation3], 0
    %7 = vsyncpa [#allocation4], 0
    // Predicated region
    $region2: #{tpu_custom_call.1} parent=1 // pred_check
      _
    $region3: #{tpu_custom_call.1} parent=1 // pred_check_branch
      %9 = sbr.rel (0) target = $region5
    $region4: #{tpu_custom_call.1} parent=1 // pred_region
      %s11 = ssub.s32 256, 256
      %12 = vsyncadd [#allocation3], %s11
      %s14 = sshll.u32 [#allocation2], 4
      %s15 = int_to_ptr.vmem [resolvable:$true] %s14
      %17 = dma.hbm_to_vmem [thread:$0]  %s0, 256, %s15, [#allocation3]
    $region5: #{tpu_custom_call.1} parent=1 // pred_fallthru
      _
    // Predicated region
    $region6: #{tpu_custom_call.1} parent=1 // pred_check
      _
    $region7: #{tpu_custom_call.1} parent=1 // pred_check_branch
      %19 = sbr.rel (0) target = $region9
    $region8: #{tpu_custom_call.1} parent=1 // pred_region
      %20 = dma.done [#allocation3], 256
    $region9: #{tpu_custom_call.1} parent=1 // pred_fallthru
      _
    %v21 = vld [vmem:[#allocation2] ss:$8 sm:$0x3]
    %s22 = scalar_lea.vmem [#allocation2], 1
    %v23 = vld [vmem:[%s22] ss:$8 sm:$0x3]
    %s24 = scalar_lea.vmem [#allocation2], 2
    %v25 = vld [vmem:[%s24] ss:$8 sm:$0x3]
    %s26 = scalar_lea.vmem [#allocation2], 3
    %v27 = vld [vmem:[%s26] ss:$8 sm:$0x3]
    %s28 = scalar_lea.vmem [#allocation2], 4
    %v29 = vld [vmem:[%s28] ss:$8 sm:$0x3]
    %s30 = scalar_lea.vmem [#allocation2], 5
    %v31 = vld [vmem:[%s30] ss:$8 sm:$0x3]
    %s32 = scalar_lea.vmem [#allocation2], 6
    %v33 = vld [vmem:[%s32] ss:$8 sm:$0x3]
    %v34 = vmul.f32 %v29, %v25
    %v35 = vmul.f32 %v34, 0.1
    %v36 = vadd.f32 %v21, %v35
    %v37 = vlaneseq
    %vm38 = vcmp.ge.s32.totalorder %v37, 0
    %vm39 = vcmp.lt.s32.totalorder %v37, 256
    %vm40 = vmand %vm38, %vm39
    %41 = vst.msk [vmem:[#allocation5] ss:$8 sm:$0x3] %vm40, %v36
    %42 = vst.msk [vmem:[#allocation5] ss:$8 sm:$0x0] %vm40, %v36
    %v43 = vmul.f32 %v29, %v27
    %v44 = vmul.f32 %v43, 0.1
    %v45 = vadd.f32 %v23, %v44
    %s46 = scalar_lea.vmem [#allocation5], 1
    %47 = vst.msk [vmem:[%s46] ss:$8 sm:$0x3] %vm40, %v45
    %48 = vst.msk [vmem:[%s46] ss:$8 sm:$0x0] %vm40, %v45
    %v49 = vmul.f32 %v33, %v27
    %v50 = vmul.f32 %v49, 0.1
    %v51 = vsub.f32 %v25, %v50
    %s52 = scalar_lea.vmem [#allocation5], 2
    %53 = vst.msk [vmem:[%s52] ss:$8 sm:$0x3] %vm40, %v51
    %54 = vst.msk [vmem:[%s52] ss:$8 sm:$0x0] %vm40, %v51
    %v55 = vmul.f32 %v33, %v25
    %v56 = vmul.f32 %v55, 0.1
    %v57 = vadd.f32 %v27, %v56
    %s58 = scalar_lea.vmem [#allocation5], 3
    %59 = vst.msk [vmem:[%s58] ss:$8 sm:$0x3] %vm40, %v57
    %60 = vst.msk [vmem:[%s58] ss:$8 sm:$0x0] %vm40, %v57
    %v61 = vmul.f32 %v31, 0.1
    %v62 = vadd.f32 %v29, %v61
    %s63 = scalar_lea.vmem [#allocation5], 4
    %64 = vst.msk [vmem:[%s63] ss:$8 sm:$0x3] %vm40, %v62
    %65 = vst.msk [vmem:[%s63] ss:$8 sm:$0x0] %vm40, %v62
    // Predicated region
    $region10: #{tpu_custom_call.1} parent=1 // pred_check
      _
    $region11: #{tpu_custom_call.1} parent=1 // pred_check_branch
      %67 = sbr.rel (0) target = $region13
    $region12: #{tpu_custom_call.1} parent=1 // pred_region
      %s69 = ssub.s32 256, 256
      %70 = vsyncadd [#allocation4], %s69
      %s72 = sshll.u32 [#allocation5], 4
      %s73 = int_to_ptr.vmem [resolvable:$true] %s72
      %75 = dma.vmem_to_hbm [thread:$0]  %s73, 256, %s1, [#allocation4]
    $region13: #{tpu_custom_call.1} parent=1 // pred_fallthru
      _
    // Predicated region
    $region14: #{tpu_custom_call.1} parent=1 // pred_check
      _
    $region15: #{tpu_custom_call.1} parent=1 // pred_check_branch
      %77 = sbr.rel (0) target = $region17
    $region16: #{tpu_custom_call.1} parent=1 // pred_region
      %78 = dma.done [#allocation4], 256
    $region17: #{tpu_custom_call.1} parent=1 // pred_fallthru
      _
    %79 = vsyncpa [#allocation3], 1
    %80 = vsyncpa [#allocation4], 1

</llo_original>
